<compile_context>
chip_gen: v7x
topology: tpu7x:2x2x1
jax: 0.10.0
libtpu: 0.0.40
codegen_flags: <defaults>
</compile_context>

<pallas_src>
import jax
import jax.numpy as jnp
from jax.experimental import pallas as pl
from jax.experimental.pallas import tpu as pltpu


def qnetwork_kernel(x_ref, w1_ref, w2_ref, w3_ref, b_ref, out_ref):
    x = x_ref[...]

    h1_w = w1_ref.shape[1]          # 2 * hidsize1 (512)
    h2_w = w2_ref.shape[1]          # 2 * hidsize2 (256)
    h3_w = w3_ref.shape[1]          # 1 + action_size

    # Packed bias row: [b1v|b1a | b2v|b2a | b3v|b3a]; offsets 0 and h1_w are
    # 128-lane aligned, so these slices are free.
    b1 = b_ref[:, 0:h1_w]
    b2 = b_ref[:, h1_w:h1_w + h2_w]
    b3 = b_ref[:, h1_w + h2_w:h1_w + h2_w + h3_w]

    # Layer 1: both streams share the input x -> single wide matmul.
    h1 = jnp.dot(x, w1_ref[...], preferred_element_type=jnp.float32) + b1
    h1 = jnp.maximum(h1, 0.0)                                  # [val1 | adv1]

    # Layer 2: block-diagonal weight keeps the streams independent.
    h2 = jnp.dot(h1, w2_ref[...], preferred_element_type=jnp.float32) + b2
    h2 = jnp.maximum(h2, 0.0)                                  # [val2 | adv2]

    # Layer 3: block-diagonal weight -> one (B, 1 + action_size) head tile.
    y3 = jnp.dot(h2, w3_ref[...], preferred_element_type=jnp.float32) + b3

    val = y3[:, 0:1]                                           # (B, 1)
    adv = y3[:, 1:]                                            # (B, action_size)

    # Dueling combine, global scalar mean (matches torch's adv.mean() w/o dim).
    out_ref[...] = (val + adv - jnp.mean(adv)).astype(out_ref.dtype)


def qnetwork_forward(x, packed):
    """x: (B, state_size) f32.  packed: (w1, w2, w3, b) from pack_params()."""
    w1, w2, w3, b = packed
    B = x.shape[0]
    action_size = w3.shape[1] - 1

    vmem = pl.BlockSpec(memory_space=pltpu.MemorySpace.VMEM)

    return pl.pallas_call(
        qnetwork_kernel,
        out_shape=jax.ShapeDtypeStruct((B, action_size), jnp.float32),
        in_specs=[vmem] * 5,
        out_specs=vmem,
    )(x, w1, w2, w3, b)


def init_params(key, state_size, action_size, hidsize1=256, hidsize2=128):
    """PyTorch-style uniform(+-1/sqrt(fan_in)) init.

    Weights stored as (in_features, out_features); biases as (1, out)."""
    def linear(key, fan_in, fan_out):
        kw, kb = jax.random.split(key)
        bound = 1.0 / jnp.sqrt(jnp.float32(fan_in))
        w = jax.random.uniform(kw, (fan_in, fan_out), jnp.float32, -bound, bound)
        b = jax.random.uniform(kb, (1, fan_out), jnp.float32, -bound, bound)
        return w, b

    keys = jax.random.split(key, 6)
    w1v, b1v = linear(keys[0], state_size, hidsize1)
    w2v, b2v = linear(keys[1], hidsize1, hidsize2)
    w3v, b3v = linear(keys[2], hidsize2, 1)
    w1a, b1a = linear(keys[3], state_size, hidsize1)
    w2a, b2a = linear(keys[4], hidsize1, hidsize2)
    w3a, b3a = linear(keys[5], hidsize2, action_size)
    return dict(
        w1v=w1v, b1v=b1v, w2v=w2v, b2v=b2v, w3v=w3v, b3v=b3v,
        w1a=w1a, b1a=b1a, w2a=w2a, b2a=b2a, w3a=w3a, b3a=b3a,
    )


def pack_params(p):
    """Fuse value/advantage weights into wide / block-diagonal matrices and all
    biases into a single row (one DMA each)."""
    h1 = p["w1v"].shape[1]          # hidsize1
    h2 = p["w2v"].shape[1]          # hidsize2
    a = p["w3a"].shape[1]           # action_size
    f32 = jnp.float32

    w1 = jnp.concatenate([p["w1v"], p["w1a"]], axis=1)               # (S, 2*h1)
    w2 = jnp.block([[p["w2v"], jnp.zeros((h1, h2), f32)],
                    [jnp.zeros((h1, h2), f32), p["w2a"]]])           # (2*h1, 2*h2)
    w3 = jnp.block([[p["w3v"], jnp.zeros((h2, a), f32)],
                    [jnp.zeros((h2, 1), f32), p["w3a"]]])            # (2*h2, 1+a)
    b = jnp.concatenate([p["b1v"], p["b1a"],
                         p["b2v"], p["b2a"],
                         p["b3v"], p["b3a"]], axis=1)                # (1, 2h1+2h2+1+a)
    return w1, w2, w3, b


def qnetwork_ref(x, p):
    """Pure-JAX reference matching the PyTorch forward exactly."""
    val = jax.nn.relu(x @ p["w1v"] + p["b1v"])
    val = jax.nn.relu(val @ p["w2v"] + p["b2v"])
    val = val @ p["w3v"] + p["b3v"]
    adv = jax.nn.relu(x @ p["w1a"] + p["b1a"])
    adv = jax.nn.relu(adv @ p["w2a"] + p["b2a"])
    adv = adv @ p["w3a"] + p["b3a"]
    return val + adv - jnp.mean(adv)


if __name__ == "__main__":
    key = jax.random.PRNGKey(0)
    k_param, k_x = jax.random.split(key)

    # Small shapes consistent with the module: batch=8, state_size=32,
    # action_size=4, default hidden sizes 256 / 128.
    B, state_size, action_size = 8, 32, 4
    params = init_params(k_param, state_size, action_size)
    x = jax.random.normal(k_x, (B, state_size), dtype=jnp.float32)

    packed = pack_params(params)
    out = qnetwork_forward(x, packed)
    out = jax.block_until_ready(out)

    ref = qnetwork_ref(x, params)
    assert out.shape == (B, action_size)
    assert jnp.allclose(out, ref, atol=1e-4, rtol=1e-4), "mismatch vs reference"

    print("KERNEL_OK")
</pallas_src>

<mosaic_0001>
module attributes {stable_mosaic.version = 11 : i64} {
  func.func @qnetwork_kernel(%arg0: memref<8x32xf32, #tpu.memory_space<vmem>>, %arg1: memref<32x512xf32, #tpu.memory_space<vmem>>, %arg2: memref<512x256xf32, #tpu.memory_space<vmem>>, %arg3: memref<256x5xf32, #tpu.memory_space<vmem>>, %arg4: memref<1x773xf32, #tpu.memory_space<vmem>>, %arg5: memref<8x4xf32, #tpu.memory_space<vmem>>) attributes {dimension_semantics = [], scalar_prefetch = 0 : i64, scratch_operands = 0 : i64, tpu.core_type = #tpu.core_type<tc>} {
    %c0 = arith.constant 0 : index
    %c0_0 = arith.constant 0 : index
    %0 = vector.load %arg0[%c0, %c0_0] : memref<8x32xf32, #tpu.memory_space<vmem>>, vector<8x32xf32>
    %c0_1 = arith.constant 0 : index
    %c0_2 = arith.constant 0 : index
    %1 = vector.load %arg4[%c0_1, %c0_2] : memref<1x773xf32, #tpu.memory_space<vmem>>, vector<1x512xf32>
    %c0_3 = arith.constant 0 : index
    %c512 = arith.constant 512 : index
    %2 = vector.load %arg4[%c0_3, %c512] : memref<1x773xf32, #tpu.memory_space<vmem>>, vector<1x256xf32>
    %c0_4 = arith.constant 0 : index
    %c768 = arith.constant 768 : index
    %3 = vector.load %arg4[%c0_4, %c768] : memref<1x773xf32, #tpu.memory_space<vmem>>, vector<1x5xf32>
    %c0_5 = arith.constant 0 : index
    %c0_6 = arith.constant 0 : index
    %4 = vector.load %arg1[%c0_5, %c0_6] : memref<32x512xf32, #tpu.memory_space<vmem>>, vector<32x512xf32>
    %cst = arith.constant dense<0.000000e+00> : vector<8x512xf32>
    %5 = tpu.matmul %0, %4, %cst {dimension_numbers = #tpu.dot_dimension_numbers<[1], [0], [0], [1], [0, 0, 1, 1], [], []>} : vector<8x32xf32>, vector<32x512xf32>, vector<8x512xf32> -> vector<8x512xf32>
    %6 = vector.broadcast %1 : vector<1x512xf32> to vector<8x512xf32>
    %7 = arith.addf %5, %6 : vector<8x512xf32>
    %cst_7 = arith.constant 0.000000e+00 : f32
    %8 = vector.broadcast %cst_7 : f32 to vector<8x512xf32>
    %9 = arith.maximumf %7, %8 : vector<8x512xf32>
    %c0_8 = arith.constant 0 : index
    %c0_9 = arith.constant 0 : index
    %10 = vector.load %arg2[%c0_8, %c0_9] : memref<512x256xf32, #tpu.memory_space<vmem>>, vector<512x256xf32>
    %cst_10 = arith.constant dense<0.000000e+00> : vector<8x256xf32>
    %11 = tpu.matmul %9, %10, %cst_10 {dimension_numbers = #tpu.dot_dimension_numbers<[1], [0], [0], [1], [0, 0, 1, 1], [], []>} : vector<8x512xf32>, vector<512x256xf32>, vector<8x256xf32> -> vector<8x256xf32>
    %12 = vector.broadcast %2 : vector<1x256xf32> to vector<8x256xf32>
    %13 = arith.addf %11, %12 : vector<8x256xf32>
    %cst_11 = arith.constant 0.000000e+00 : f32
    %14 = vector.broadcast %cst_11 : f32 to vector<8x256xf32>
    %15 = arith.maximumf %13, %14 : vector<8x256xf32>
    %c0_12 = arith.constant 0 : index
    %c0_13 = arith.constant 0 : index
    %16 = vector.load %arg3[%c0_12, %c0_13] : memref<256x5xf32, #tpu.memory_space<vmem>>, vector<256x5xf32>
    %cst_14 = arith.constant dense<0.000000e+00> : vector<8x5xf32>
    %17 = tpu.matmul %15, %16, %cst_14 {dimension_numbers = #tpu.dot_dimension_numbers<[1], [0], [0], [1], [0, 0, 1, 1], [], []>} : vector<8x256xf32>, vector<256x5xf32>, vector<8x5xf32> -> vector<8x5xf32>
    %18 = vector.broadcast %3 : vector<1x5xf32> to vector<8x5xf32>
    %19 = arith.addf %17, %18 : vector<8x5xf32>
    %20 = vector.extract_strided_slice %19 {offsets = [0, 0], sizes = [8, 1], strides = [1, 1]} : vector<8x5xf32> to vector<8x1xf32>
    %21 = vector.extract_strided_slice %19 {offsets = [0, 1], sizes = [8, 4], strides = [1, 1]} : vector<8x5xf32> to vector<8x4xf32>
    %22 = vector.broadcast %20 : vector<8x1xf32> to vector<8x4xf32>
    %23 = arith.addf %22, %21 : vector<8x4xf32>
    %24 = vector.shape_cast %21 : vector<8x4xf32> to vector<1x8x4xf32>
    %cst_15 = arith.constant dense<0.000000e+00> : vector<1xf32>
    %25 = vector.multi_reduction <add>, %24, %cst_15 [1, 2] : vector<1x8x4xf32> to vector<1xf32>
    %26 = vector.shape_cast %25 : vector<1xf32> to vector<1x1x1xf32>
    %27 = vector.extract %26[0, 0, 0] : f32 from vector<1x1x1xf32>
    %cst_16 = arith.constant 3.200000e+01 : f32
    %28 = arith.divf %27, %cst_16 : f32
    %29 = vector.broadcast %28 : f32 to vector<8x4xf32>
    %30 = arith.subf %23, %29 : vector<8x4xf32>
    %c0_17 = arith.constant 0 : index
    %c0_18 = arith.constant 0 : index
    %31 = vector.load %arg5[%c0_17, %c0_18] : memref<8x4xf32, #tpu.memory_space<vmem>>, vector<8x4xf32>
    tpu.vector_store %arg5[%c0_17, %c0_18], %30 {strides = array<i32>} : memref<8x4xf32, #tpu.memory_space<vmem>>, vector<8x4xf32>,
    return
  }
}

</mosaic_0001>

<llo_original>
// kernel: tpu_custom_call.1
$region0: #{tpu_custom_call.1}
  #allocation0 [shape = 'u32[]', space=smem, size = 0x4, offset = 0x4, fixed_abs, tag = 'smem constant byte address 0x4 - core index']
  #allocation1 [shape = 'u32[144,128]{1,0:T(1,128)}', space=vmem, size = 0x12000, scoped, tag = 'internal scratch']
  %s0 = inlined_call_operand.vmem [shape: f32[8,32], index: 0, kind: input, shape index: {}]
  %s1 = inlined_call_operand.vmem [shape: f32[32,512], index: 1, kind: input, shape index: {}]
  %s2 = inlined_call_operand.hbm [shape: f32[512,256], index: 2, kind: input, shape index: {}]
  %s3 = inlined_call_operand.vmem [shape: f32[256,5], index: 3, kind: input, shape index: {}]
  %s4 = inlined_call_operand.vmem [shape: f32[1,773], index: 4, kind: input, shape index: {}]
  %s5 = inlined_call_operand.vmem [shape: f32[8,4], index: 5, kind: output, shape index: {}]
  %s6 = sld [smem:[#allocation0]]
  $region34: #{tpu_custom_call.1} parent=0
    _
  %s8 = ssub.s32 1, %s6
  %s9 = scalar_select 0, %s8, %s6
  $region1: #{tpu_custom_call.1} parent=0
    #allocation2 [shape = 'u8[524288]{0}', space=vmem, size = 0x80000, scoped, tag = 'input window, operand 2, single buffered']
    #allocation3 [shape = 's32[1]{0}', space=sflag, size = 0x4, scoped, tag = 'scoped memory for tpu_custom_call.1']
    %10 = vsyncpa [#allocation3], 0
    // Predicated region
    $region2: #{tpu_custom_call.1} parent=1 // pred_check
      _
    $region3: #{tpu_custom_call.1} parent=1 // pred_check_branch
      %12 = sbr.rel (0) target = $region5
    $region4: #{tpu_custom_call.1} parent=1 // pred_region
      _
    $region5: #{tpu_custom_call.1} parent=1 // pred_fallthru
      _
    // Predicated region
    $region6: #{tpu_custom_call.1} parent=1 // pred_check
      _
    $region7: #{tpu_custom_call.1} parent=1 // pred_check_branch
      %14 = sbr.rel (0) target = $region9
    $region8: #{tpu_custom_call.1} parent=1 // pred_region
      _
    $region9: #{tpu_custom_call.1} parent=1 // pred_fallthru
      _
    // Predicated region
    $region10: #{tpu_custom_call.1} parent=1 // pred_check
      _
    $region11: #{tpu_custom_call.1} parent=1 // pred_check_branch
      %16 = sbr.rel (0) target = $region13
    $region12: #{tpu_custom_call.1} parent=1 // pred_region
      %s18 = ssub.s32 16384, 16384
      %19 = vsyncadd [#allocation3], %s18
      %s20 = sshll.u32 [#allocation2], 4
      %s21 = int_to_ptr.vmem [resolvable:$true] %s20
      %26 = dma.hbm_to_vmem [thread:$0]  %s2, 16384, %s21, [#allocation3], 256, 256, 16
    $region13: #{tpu_custom_call.1} parent=1 // pred_fallthru
      _
    // Predicated region
    $region14: #{tpu_custom_call.1} parent=1 // pred_check
      _
    $region15: #{tpu_custom_call.1} parent=1 // pred_check_branch
      %28 = sbr.rel (0) target = $region17
    $region16: #{tpu_custom_call.1} parent=1 // pred_region
      _
    $region17: #{tpu_custom_call.1} parent=1 // pred_fallthru
      _
    // Predicated region
    $region18: #{tpu_custom_call.1} parent=1 // pred_check
      _
    $region19: #{tpu_custom_call.1} parent=1 // pred_check_branch
      %30 = sbr.rel (0) target = $region21
    $region20: #{tpu_custom_call.1} parent=1 // pred_region
      _
    $region21: #{tpu_custom_call.1} parent=1 // pred_fallthru
      _
    // Predicated region
    $region22: #{tpu_custom_call.1} parent=1 // pred_check
      _
    $region23: #{tpu_custom_call.1} parent=1 // pred_check_branch
      %32 = sbr.rel (0) target = $region25
    $region24: #{tpu_custom_call.1} parent=1 // pred_region
      %33 = dma.done [#allocation3], 16384
    $region25: #{tpu_custom_call.1} parent=1 // pred_fallthru
      _
    %v34 = vld [vmem:[%s0] sm:$0xff]
    %v35 = vld [vmem:[%s4] sm:$0xf]
    %v36 = vld [vmem:[%s4 + $0x4] sm:$0x3]
    %v37 = vld [vmem:[%s4 + $0x6] sm:$0x1]
    %v38 = vld [vmem:[%s1] sm:$0xff]
    %v39 = vld [vmem:[%s1 + $0x8] sm:$0xff]
    %v40 = vld [vmem:[%s1 + $0x10] sm:$0xff]
    %v41 = vld [vmem:[%s1 + $0x18] sm:$0xff]
    %v42 = vld [vmem:[%s1 + $0x20] sm:$0xff]
    %v43 = vld [vmem:[%s1 + $0x28] sm:$0xff]
    %v44 = vld [vmem:[%s1 + $0x30] sm:$0xff]
    %v45 = vld [vmem:[%s1 + $0x38] sm:$0xff]
    %v46 = vld [vmem:[%s1 + $0x40] sm:$0xff]
    %v47 = vld [vmem:[%s1 + $0x48] sm:$0xff]
    %v48 = vld [vmem:[%s1 + $0x50] sm:$0xff]
    %v49 = vld [vmem:[%s1 + $0x58] sm:$0xff]
    %v50 = vld [vmem:[%s1 + $0x60] sm:$0xff]
    %v51 = vld [vmem:[%s1 + $0x68] sm:$0xff]
    %v52 = vld [vmem:[%s1 + $0x70] sm:$0xff]
    %v53 = vld [vmem:[%s1 + $0x78] sm:$0xff]
    %v55 = vlaneseq
    %v56 = vshrl.u32 %v55, 7
    %v57 = vsub.s32 0, %v56
    %v58 = vrot.slane %v35, %v57
    %v59 = vlaneseq
    %v60 = vshrl.u32 %v59, 7
    %v61 = vsub.s32 1, %v60
    %v62 = vrot.slane %v35, %v61
    %v63 = vlaneseq
    %v64 = vshrl.u32 %v63, 7
    %v65 = vsub.s32 2, %v64
    %v66 = vrot.slane %v35, %v65
    %v67 = vlaneseq
    %v68 = vshrl.u32 %v67, 7
    %v69 = vsub.s32 3, %v68
    %v70 = vrot.slane %v35, %v69
    %vm75 = vcmask 261120
    %v77 = vsel %vm75, %v34, 0
    %79 = vmatprep.subr.mxu0 %v39
    %80 = vmatpush1.msra.mxu0 %v38
    %81 = vmatprep.subr.mxu0 %v43
    %82 = vmatpush1.msra.mxu0 %v42
    %83 = vmatprep.subr.mxu0 %v47
    %84 = vmatpush1.msra.mxu0 %v46
    %85 = vmatprep.subr.mxu0 %v51
    %86 = vmatpush1.msra.mxu0 %v50
    %87 = vmatprep.subr.mxu0 0.0
    %88 = vmatpush1.msra.mxu0 0.0
    %89 = vmatprep.subr.mxu0 0.0
    %90 = vmatpush1.msra.mxu0 0.0
    %91 = vmatprep.subr.mxu0 0.0
    %92 = vmatpush1.msra.mxu0 0.0
    %93 = vmatprep.subr.mxu0 0.0
    %94 = vmatpush1.msra.mxu0 0.0
    %95 = vmatprep.subr.mxu0 0.0
    %96 = vmatpush1.msra.mxu0 0.0
    %97 = vmatprep.subr.mxu0 0.0
    %98 = vmatpush1.msra.mxu0 0.0
    %99 = vmatprep.subr.mxu0 0.0
    %100 = vmatpush1.msra.mxu0 0.0
    %101 = vmatprep.subr.mxu0 0.0
    %102 = vmatpush1.msra.mxu0 0.0
    %103 = vmatprep.subr.mxu0 0.0
    %104 = vmatpush1.msra.mxu0 0.0
    %105 = vmatprep.subr.mxu0 0.0
    %106 = vmatpush1.msra.mxu0 0.0
    %107 = vmatprep.subr.mxu0 0.0
    %108 = vmatpush1.msra.mxu0 0.0
    %109 = vmatprep.subr.mxu0 0.0
    %110 = vmatpush1.msra.mxu0 0.0
    %111 = vmatprep.subr.mxu0 0.0
    %112 = vmatpush1.msra.mxu0 0.0
    %113 = vmatprep.subr.mxu0 0.0
    %114 = vmatpush1.msra.mxu0 0.0
    %115 = vmatprep.subr.mxu0 0.0
    %116 = vmatpush1.msra.mxu0 0.0
    %117 = vmatprep.subr.mxu0 0.0
    %118 = vmatpush1.msra.mxu0 0.0
    %119 = vmatprep.subr.mxu0 0.0
    %120 = vmatpush1.msra.mxu0 0.0
    %121 = vmatprep.subr.mxu0 0.0
    %122 = vmatpush1.msra.mxu0 0.0
    %123 = vmatprep.subr.mxu0 0.0
    %124 = vmatpush1.msra.mxu0 0.0
    %125 = vmatprep.subr.mxu0 0.0
    %126 = vmatpush1.msra.mxu0 0.0
    %127 = vmatprep.subr.mxu0 0.0
    %128 = vmatpush1.msra.mxu0 0.0
    %129 = vmatprep.subr.mxu0 0.0
    %130 = vmatpush1.msra.mxu0 0.0
    %131 = vmatprep.subr.mxu0 0.0
    %132 = vmatpush1.msra.mxu0 0.0
    %133 = vmatprep.subr.mxu0 0.0
    %134 = vmatpush1.msra.mxu0 0.0
    %135 = vmatprep.subr.mxu0 0.0
    %136 = vmatpush1.msra.mxu0 0.0
    %137 = vmatprep.subr.mxu0 0.0
    %138 = vmatpush1.msra.mxu0 0.0
    %139 = vmatprep.subr.mxu0 0.0
    %140 = vmatpush1.msra.mxu0 0.0
    %141 = vmatprep.subr.mxu0 0.0
    %142 = vmatpush1.msra.mxu0 0.0
    %143 = vmatprep.mubr.f32.mxu0 0.0
    %144 = vmatmul.mubr.f32.gmra.mrb[0].mxu0 %v77
    %v145 = vpop.f32.mrb[0].mxu0
    %v146 = vadd.f32 %v58, %v145
    %v147 = vpop.f32.mrb[0].mxu0
    %v148 = vadd.f32 %v62, %v147
    %149 = vdwg.mxu0
    %150 = vmatprep.subr.mxu0 %v41
    %151 = vmatpush1.msra.mxu0 %v40
    %152 = vmatprep.subr.mxu0 %v45
    %153 = vmatpush1.msra.mxu0 %v44
    %154 = vmatprep.subr.mxu0 %v49
    %155 = vmatpush1.msra.mxu0 %v48
    %156 = vmatprep.subr.mxu0 %v53
    %157 = vmatpush1.msra.mxu0 %v52
    %158 = vmatprep.subr.mxu0 0.0
    %159 = vmatpush1.msra.mxu0 0.0
    %160 = vmatprep.subr.mxu0 0.0
    %161 = vmatpush1.msra.mxu0 0.0
    %162 = vmatprep.subr.mxu0 0.0
    %163 = vmatpush1.msra.mxu0 0.0
    %164 = vmatprep.subr.mxu0 0.0
    %165 = vmatpush1.msra.mxu0 0.0
    %166 = vmatprep.subr.mxu0 0.0
    %167 = vmatpush1.msra.mxu0 0.0
    %168 = vmatprep.subr.mxu0 0.0
    %169 = vmatpush1.msra.mxu0 0.0
    %170 = vmatprep.subr.mxu0 0.0
    %171 = vmatpush1.msra.mxu0 0.0
    %172 = vmatprep.subr.mxu0 0.0
    %173 = vmatpush1.msra.mxu0 0.0
    %174 = vmatprep.subr.mxu0 0.0
    %175 = vmatpush1.msra.mxu0 0.0
    %176 = vmatprep.subr.mxu0 0.0
    %177 = vmatpush1.msra.mxu0 0.0
    %178 = vmatprep.subr.mxu0 0.0
    %179 = vmatpush1.msra.mxu0 0.0
    %180 = vmatprep.subr.mxu0 0.0
    %181 = vmatpush1.msra.mxu0 0.0
    %182 = vmatprep.subr.mxu0 0.0
    %183 = vmatpush1.msra.mxu0 0.0
    %184 = vmatprep.subr.mxu0 0.0
    %185 = vmatpush1.msra.mxu0 0.0
    %186 = vmatprep.subr.mxu0 0.0
    %187 = vmatpush1.msra.mxu0 0.0
    %188 = vmatprep.subr.mxu0 0.0
    %189 = vmatpush1.msra.mxu0 0.0
    %190 = vmatprep.subr.mxu0 0.0
    %191 = vmatpush1.msra.mxu0 0.0
    %192 = vmatprep.subr.mxu0 0.0
    %193 = vmatpush1.msra.mxu0 0.0
    %194 = vmatprep.subr.mxu0 0.0
    %195 = vmatpush1.msra.mxu0 0.0
    %196 = vmatprep.subr.mxu0 0.0
    %197 = vmatpush1.msra.mxu0 0.0
    %198 = vmatprep.subr.mxu0 0.0
    %199 = vmatpush1.msra.mxu0 0.0
    %200 = vmatprep.subr.mxu0 0.0
    %201 = vmatpush1.msra.mxu0 0.0
    %202 = vmatprep.subr.mxu0 0.0
    %203 = vmatpush1.msra.mxu0 0.0
    %204 = vmatprep.subr.mxu0 0.0
    %205 = vmatpush1.msra.mxu0 0.0
    %206 = vmatprep.subr.mxu0 0.0
    %207 = vmatpush1.msra.mxu0 0.0
    %208 = vmatprep.subr.mxu0 0.0
    %209 = vmatpush1.msra.mxu0 0.0
    %210 = vmatprep.subr.mxu0 0.0
    %211 = vmatpush1.msra.mxu0 0.0
    %212 = vmatprep.subr.mxu0 0.0
    %213 = vmatpush1.msra.mxu0 0.0
    %214 = vmatprep.mubr.f32.mxu0 0.0
    %215 = vmatmul.mubr.f32.gmra.mrb[0].mxu0 %v77
    %v216 = vpop.f32.mrb[0].mxu0
    %v217 = vadd.f32 %v66, %v216
    %v218 = vpop.f32.mrb[0].mxu0
    %v219 = vadd.f32 %v70, %v218
    %220 = vdwg.mxu0
    %v221 = vmax.f32 %v146, 0.0
    %v222 = vmax.f32 %v148, 0.0
    %v223 = vmax.f32 %v217, 0.0
    %v224 = vmax.f32 %v219, 0.0
    %v225 = vld [vmem:[#allocation2] sm:$0xff]
    %v226 = vld [vmem:[#allocation2 + $0x8] sm:$0xff]
    %v227 = vld [vmem:[#allocation2 + $0x10] sm:$0xff]
    %v228 = vld [vmem:[#allocation2 + $0x18] sm:$0xff]
    %v229 = vld [vmem:[#allocation2 + $0x20] sm:$0xff]
    %v230 = vld [vmem:[#allocation2 + $0x28] sm:$0xff]
    %v231 = vld [vmem:[#allocation2 + $0x30] sm:$0xff]
    %v232 = vld [vmem:[#allocation2 + $0x38] sm:$0xff]
    %v233 = vld [vmem:[#allocation2 + $0x40] sm:$0xff]
    %v234 = vld [vmem:[#allocation2 + $0x48] sm:$0xff]
    %v235 = vld [vmem:[#allocation2 + $0x50] sm:$0xff]
    %v236 = vld [vmem:[#allocation2 + $0x58] sm:$0xff]
    %v237 = vld [vmem:[#allocation2 + $0x60] sm:$0xff]
    %v238 = vld [vmem:[#allocation2 + $0x68] sm:$0xff]
    %v239 = vld [vmem:[#allocation2 + $0x70] sm:$0xff]
    %v240 = vld [vmem:[#allocation2 + $0x78] sm:$0xff]
    %v241 = vld [vmem:[#allocation2 + $0x80] sm:$0xff]
    %v242 = vld [vmem:[#allocation2 + $0x88] sm:$0xff]
    %v243 = vld [vmem:[#allocation2 + $0x90] sm:$0xff]
    %v244 = vld [vmem:[#allocation2 + $0x98] sm:$0xff]
    %v245 = vld [vmem:[#allocation2 + $0xa0] sm:$0xff]
    %v246 = vld [vmem:[#allocation2 + $0xa8] sm:$0xff]
    %v247 = vld [vmem:[#allocation2 + $0xb0] sm:$0xff]
    %v248 = vld [vmem:[#allocation2 + $0xb8] sm:$0xff]
    %v249 = vld [vmem:[#allocation2 + $0xc0] sm:$0xff]
    %v250 = vld [vmem:[#allocation2 + $0xc8] sm:$0xff]
    %v251 = vld [vmem:[#allocation2 + $0xd0] sm:$0xff]
    %v252 = vld [vmem:[#allocation2 + $0xd8] sm:$0xff]
    %v253 = vld [vmem:[#allocation2 + $0xe0] sm:$0xff]
    %v254 = vld [vmem:[#allocation2 + $0xe8] sm:$0xff]
    %v255 = vld [vmem:[#allocation2 + $0xf0] sm:$0xff]
    %v256 = vld [vmem:[#allocation2 + $0xf8] sm:$0xff]
    %v257 = vld [vmem:[#allocation2 + $0x100] sm:$0xff]
    %v258 = vld [vmem:[#allocation2 + $0x108] sm:$0xff]
    %v259 = vld [vmem:[#allocation2 + $0x110] sm:$0xff]
    %v260 = vld [vmem:[#allocation2 + $0x118] sm:$0xff]
    %v261 = vld [vmem:[#allocation2 + $0x120] sm:$0xff]
    %v262 = vld [vmem:[#allocation2 + $0x128] sm:$0xff]
    %v263 = vld [vmem:[#allocation2 + $0x130] sm:$0xff]
    %v264 = vld [vmem:[#allocation2 + $0x138] sm:$0xff]
    %v265 = vld [vmem:[#allocation2 + $0x140] sm:$0xff]
    %v266 = vld [vmem:[#allocation2 + $0x148] sm:$0xff]
    %v267 = vld [vmem:[#allocation2 + $0x150] sm:$0xff]
    %v268 = vld [vmem:[#allocation2 + $0x158] sm:$0xff]
    %v269 = vld [vmem:[#allocation2 + $0x160] sm:$0xff]
    %v270 = vld [vmem:[#allocation2 + $0x168] sm:$0xff]
    %v271 = vld [vmem:[#allocation2 + $0x170] sm:$0xff]
    %v272 = vld [vmem:[#allocation2 + $0x178] sm:$0xff]
    %v273 = vld [vmem:[#allocation2 + $0x180] sm:$0xff]
    %v274 = vld [vmem:[#allocation2 + $0x188] sm:$0xff]
    %v275 = vld [vmem:[#allocation2 + $0x190] sm:$0xff]
    %v276 = vld [vmem:[#allocation2 + $0x198] sm:$0xff]
    %v277 = vld [vmem:[#allocation2 + $0x1a0] sm:$0xff]
    %v278 = vld [vmem:[#allocation2 + $0x1a8] sm:$0xff]
    %v279 = vld [vmem:[#allocation2 + $0x1b0] sm:$0xff]
    %v280 = vld [vmem:[#allocation2 + $0x1b8] sm:$0xff]
    %v281 = vld [vmem:[#allocation2 + $0x1c0] sm:$0xff]
    %v282 = vld [vmem:[#allocation2 + $0x1c8] sm:$0xff]
    %v283 = vld [vmem:[#allocation2 + $0x1d0] sm:$0xff]
    %v284 = vld [vmem:[#allocation2 + $0x1d8] sm:$0xff]
    %v285 = vld [vmem:[#allocation2 + $0x1e0] sm:$0xff]
    %v286 = vld [vmem:[#allocation2 + $0x1e8] sm:$0xff]
    %v287 = vld [vmem:[#allocation2 + $0x1f0] sm:$0xff]
    %v288 = vld [vmem:[#allocation2 + $0x1f8] sm:$0xff]
    %v289 = vld [vmem:[#allocation2 + $0x200] sm:$0xff]
    %v290 = vld [vmem:[#allocation2 + $0x208] sm:$0xff]
    %v291 = vld [vmem:[#allocation2 + $0x210] sm:$0xff]
    %v292 = vld [vmem:[#allocation2 + $0x218] sm:$0xff]
    %v293 = vld [vmem:[#allocation2 + $0x220] sm:$0xff]
    %v294 = vld [vmem:[#allocation2 + $0x228] sm:$0xff]
    %v295 = vld [vmem:[#allocation2 + $0x230] sm:$0xff]
    %v296 = vld [vmem:[#allocation2 + $0x238] sm:$0xff]
    %v297 = vld [vmem:[#allocation2 + $0x240] sm:$0xff]
    %v298 = vld [vmem:[#allocation2 + $0x248] sm:$0xff]
    %v299 = vld [vmem:[#allocation2 + $0x250] sm:$0xff]
    %v300 = vld [vmem:[#allocation2 + $0x258] sm:$0xff]
    %v301 = vld [vmem:[#allocation2 + $0x260] sm:$0xff]
    %v302 = vld [vmem:[#allocation2 + $0x268] sm:$0xff]
    %v303 = vld [vmem:[#allocation2 + $0x270] sm:$0xff]
    %v304 = vld [vmem:[#allocation2 + $0x278] sm:$0xff]
    %v305 = vld [vmem:[#allocation2 + $0x280] sm:$0xff]
    %v306 = vld [vmem:[#allocation2 + $0x288] sm:$0xff]
    %v307 = vld [vmem:[#allocation2 + $0x290] sm:$0xff]
    %v308 = vld [vmem:[#allocation2 + $0x298] sm:$0xff]
    %v309 = vld [vmem:[#allocation2 + $0x2a0] sm:$0xff]
    %v310 = vld [vmem:[#allocation2 + $0x2a8] sm:$0xff]
    %v311 = vld [vmem:[#allocation2 + $0x2b0] sm:$0xff]
    %v312 = vld [vmem:[#allocation2 + $0x2b8] sm:$0xff]
    %v313 = vld [vmem:[#allocation2 + $0x2c0] sm:$0xff]
    %v314 = vld [vmem:[#allocation2 + $0x2c8] sm:$0xff]
    %v315 = vld [vmem:[#allocation2 + $0x2d0] sm:$0xff]
    %v316 = vld [vmem:[#allocation2 + $0x2d8] sm:$0xff]
    %v317 = vld [vmem:[#allocation2 + $0x2e0] sm:$0xff]
    %v318 = vld [vmem:[#allocation2 + $0x2e8] sm:$0xff]
    %v319 = vld [vmem:[#allocation2 + $0x2f0] sm:$0xff]
    %v320 = vld [vmem:[#allocation2 + $0x2f8] sm:$0xff]
    %v321 = vld [vmem:[#allocation2 + $0x300] sm:$0xff]
    %v322 = vld [vmem:[#allocation2 + $0x308] sm:$0xff]
    %v323 = vld [vmem:[#allocation2 + $0x310] sm:$0xff]
    %v324 = vld [vmem:[#allocation2 + $0x318] sm:$0xff]
    %v325 = vld [vmem:[#allocation2 + $0x320] sm:$0xff]
    %v326 = vld [vmem:[#allocation2 + $0x328] sm:$0xff]
    %v327 = vld [vmem:[#allocation2 + $0x330] sm:$0xff]
    %v328 = vld [vmem:[#allocation2 + $0x338] sm:$0xff]
    %v329 = vld [vmem:[#allocation2 + $0x340] sm:$0xff]
    %v330 = vld [vmem:[#allocation2 + $0x348] sm:$0xff]
    %v331 = vld [vmem:[#allocation2 + $0x350] sm:$0xff]
    %v332 = vld [vmem:[#allocation2 + $0x358] sm:$0xff]
    %v333 = vld [vmem:[#allocation2 + $0x360] sm:$0xff]
    %v334 = vld [vmem:[#allocation2 + $0x368] sm:$0xff]
    %v335 = vld [vmem:[#allocation2 + $0x370] sm:$0xff]
    %v336 = vld [vmem:[#allocation2 + $0x378] sm:$0xff]
    %v337 = vld [vmem:[#allocation2 + $0x380] sm:$0xff]
    %v338 = vld [vmem:[#allocation2 + $0x388] sm:$0xff]
    %v339 = vld [vmem:[#allocation2 + $0x390] sm:$0xff]
    %v340 = vld [vmem:[#allocation2 + $0x398] sm:$0xff]
    %v341 = vld [vmem:[#allocation2 + $0x3a0] sm:$0xff]
    %v342 = vld [vmem:[#allocation2 + $0x3a8] sm:$0xff]
    %v343 = vld [vmem:[#allocation2 + $0x3b0] sm:$0xff]
    %v344 = vld [vmem:[#allocation2 + $0x3b8] sm:$0xff]
    %v345 = vld [vmem:[#allocation2 + $0x3c0] sm:$0xff]
    %v346 = vld [vmem:[#allocation2 + $0x3c8] sm:$0xff]
    %v347 = vld [vmem:[#allocation2 + $0x3d0] sm:$0xff]
    %v348 = vld [vmem:[#allocation2 + $0x3d8] sm:$0xff]
    %v349 = vld [vmem:[#allocation2 + $0x3e0] sm:$0xff]
    %v350 = vld [vmem:[#allocation2 + $0x3e8] sm:$0xff]
    %v351 = vld [vmem:[#allocation2 + $0x3f0] sm:$0xff]
    %v352 = vld [vmem:[#allocation2 + $0x3f8] sm:$0xff]
    %v354 = vlaneseq
    %v355 = vshrl.u32 %v354, 7
    %v356 = vsub.s32 0, %v355
    %v357 = vrot.slane %v36, %v356
    %v358 = vlaneseq
    %v359 = vshrl.u32 %v358, 7
    %v360 = vsub.s32 1, %v359
    %v361 = vrot.slane %v36, %v360
    %364 = vmatprep.subr.mxu0 %v226
    %365 = vmatpush1.msra.mxu0 %v225
    %366 = vmatprep.subr.mxu0 %v228
    %367 = vmatpush1.msra.mxu0 %v227
    %368 = vmatprep.subr.mxu0 %v230
    %369 = vmatpush1.msra.mxu0 %v229
    %370 = vmatprep.subr.mxu0 %v232
    %371 = vmatpush1.msra.mxu0 %v231
    %372 = vmatprep.subr.mxu0 %v234
    %373 = vmatpush1.msra.mxu0 %v233
    %374 = vmatprep.subr.mxu0 %v236
    %375 = vmatpush1.msra.mxu0 %v235
    %376 = vmatprep.subr.mxu0 %v238
    %377 = vmatpush1.msra.mxu0 %v237
    %378 = vmatprep.subr.mxu0 %v240
    %379 = vmatpush1.msra.mxu0 %v239
    %380 = vmatprep.subr.mxu0 %v242
    %381 = vmatpush1.msra.mxu0 %v241
    %382 = vmatprep.subr.mxu0 %v244
    %383 = vmatpush1.msra.mxu0 %v243
    %384 = vmatprep.subr.mxu0 %v246
    %385 = vmatpush1.msra.mxu0 %v245
    %386 = vmatprep.subr.mxu0 %v248
    %387 = vmatpush1.msra.mxu0 %v247
    %388 = vmatprep.subr.mxu0 %v250
    %389 = vmatpush1.msra.mxu0 %v249
    %390 = vmatprep.subr.mxu0 %v252
    %391 = vmatpush1.msra.mxu0 %v251
    %392 = vmatprep.subr.mxu0 %v254
    %393 = vmatpush1.msra.mxu0 %v253
    %394 = vmatprep.subr.mxu0 %v256
    %395 = vmatpush1.msra.mxu0 %v255
    %396 = vmatprep.subr.mxu0 %v258
    %397 = vmatpush1.msra.mxu0 %v257
    %398 = vmatprep.subr.mxu0 %v260
    %399 = vmatpush1.msra.mxu0 %v259
    %400 = vmatprep.subr.mxu0 %v262
    %401 = vmatpush1.msra.mxu0 %v261
    %402 = vmatprep.subr.mxu0 %v264
    %403 = vmatpush1.msra.mxu0 %v263
    %404 = vmatprep.subr.mxu0 %v266
    %405 = vmatpush1.msra.mxu0 %v265
    %406 = vmatprep.subr.mxu0 %v268
    %407 = vmatpush1.msra.mxu0 %v267
    %408 = vmatprep.subr.mxu0 %v270
    %409 = vmatpush1.msra.mxu0 %v269
    %410 = vmatprep.subr.mxu0 %v272
    %411 = vmatpush1.msra.mxu0 %v271
    %412 = vmatprep.subr.mxu0 %v274
    %413 = vmatpush1.msra.mxu0 %v273
    %414 = vmatprep.subr.mxu0 %v276
    %415 = vmatpush1.msra.mxu0 %v275
    %416 = vmatprep.subr.mxu0 %v278
    %417 = vmatpush1.msra.mxu0 %v277
    %418 = vmatprep.subr.mxu0 %v280
    %419 = vmatpush1.msra.mxu0 %v279
    %420 = vmatprep.subr.mxu0 %v282
    %421 = vmatpush1.msra.mxu0 %v281
    %422 = vmatprep.subr.mxu0 %v284
    %423 = vmatpush1.msra.mxu0 %v283
    %424 = vmatprep.subr.mxu0 %v286
    %425 = vmatpush1.msra.mxu0 %v285
    %426 = vmatprep.subr.mxu0 %v288
    %427 = vmatpush1.msra.mxu0 %v287
    %428 = vmatprep.mubr.f32.mxu0 %v222
    %429 = vmatmul.mubr.f32.gmra.mrb[0].mxu0 %v221
    %v430 = vpop.f32.mrb[0].mxu0
    %v431 = vadd.f32 %v357, %v430
    %v432 = vpop.f32.mrb[0].mxu0
    %v433 = vadd.f32 %v361, %v432
    %434 = vdwg.mxu0
    %435 = vmatprep.subr.mxu0 %v290
    %436 = vmatpush1.msra.mxu0 %v289
    %437 = vmatprep.subr.mxu0 %v292
    %438 = vmatpush1.msra.mxu0 %v291
    %439 = vmatprep.subr.mxu0 %v294
    %440 = vmatpush1.msra.mxu0 %v293
    %441 = vmatprep.subr.mxu0 %v296
    %442 = vmatpush1.msra.mxu0 %v295
    %443 = vmatprep.subr.mxu0 %v298
    %444 = vmatpush1.msra.mxu0 %v297
    %445 = vmatprep.subr.mxu0 %v300
    %446 = vmatpush1.msra.mxu0 %v299
    %447 = vmatprep.subr.mxu0 %v302
    %448 = vmatpush1.msra.mxu0 %v301
    %449 = vmatprep.subr.mxu0 %v304
    %450 = vmatpush1.msra.mxu0 %v303
    %451 = vmatprep.subr.mxu0 %v306
    %452 = vmatpush1.msra.mxu0 %v305
    %453 = vmatprep.subr.mxu0 %v308
    %454 = vmatpush1.msra.mxu0 %v307
    %455 = vmatprep.subr.mxu0 %v310
    %456 = vmatpush1.msra.mxu0 %v309
    %457 = vmatprep.subr.mxu0 %v312
    %458 = vmatpush1.msra.mxu0 %v311
    %459 = vmatprep.subr.mxu0 %v314
    %460 = vmatpush1.msra.mxu0 %v313
    %461 = vmatprep.subr.mxu0 %v316
    %462 = vmatpush1.msra.mxu0 %v315
    %463 = vmatprep.subr.mxu0 %v318
    %464 = vmatpush1.msra.mxu0 %v317
    %465 = vmatprep.subr.mxu0 %v320
    %466 = vmatpush1.msra.mxu0 %v319
    %467 = vmatprep.subr.mxu0 %v322
    %468 = vmatpush1.msra.mxu0 %v321
    %469 = vmatprep.subr.mxu0 %v324
    %470 = vmatpush1.msra.mxu0 %v323
    %471 = vmatprep.subr.mxu0 %v326
    %472 = vmatpush1.msra.mxu0 %v325
    %473 = vmatprep.subr.mxu0 %v328
    %474 = vmatpush1.msra.mxu0 %v327
    %475 = vmatprep.subr.mxu0 %v330
    %476 = vmatpush1.msra.mxu0 %v329
    %477 = vmatprep.subr.mxu0 %v332
    %478 = vmatpush1.msra.mxu0 %v331
    %479 = vmatprep.subr.mxu0 %v334
    %480 = vmatpush1.msra.mxu0 %v333
    %481 = vmatprep.subr.mxu0 %v336
    %482 = vmatpush1.msra.mxu0 %v335
    %483 = vmatprep.subr.mxu0 %v338
    %484 = vmatpush1.msra.mxu0 %v337
    %485 = vmatprep.subr.mxu0 %v340
    %486 = vmatpush1.msra.mxu0 %v339
    %487 = vmatprep.subr.mxu0 %v342
    %488 = vmatpush1.msra.mxu0 %v341
    %489 = vmatprep.subr.mxu0 %v344
    %490 = vmatpush1.msra.mxu0 %v343
    %491 = vmatprep.subr.mxu0 %v346
    %492 = vmatpush1.msra.mxu0 %v345
    %493 = vmatprep.subr.mxu0 %v348
    %494 = vmatpush1.msra.mxu0 %v347
    %495 = vmatprep.subr.mxu0 %v350
    %496 = vmatpush1.msra.mxu0 %v349
    %497 = vmatprep.subr.mxu0 %v352
    %498 = vmatpush1.msra.mxu0 %v351
    %499 = vmatprep.mubr.f32.mxu0 %v224
    %500 = vmatmul.mubr.f32.gmra.mrb[0].mxu0 %v223
    %v501 = vpop.f32.mrb[0].mxu0
    %v502 = vadd.f32 %v431, %v501
    %v503 = vpop.f32.mrb[0].mxu0
    %v504 = vadd.f32 %v433, %v503
    %505 = vdwg.mxu0
    %v506 = vmax.f32 %v502, 0.0
    %v507 = vmax.f32 %v504, 0.0
    %v508 = vld [vmem:[%s3] sm:$0xff]
    %v509 = vld [vmem:[%s3 + $0x8] sm:$0xff]
    %v510 = vld [vmem:[%s3 + $0x10] sm:$0xff]
    %v511 = vld [vmem:[%s3 + $0x18] sm:$0xff]
    %v512 = vld [vmem:[%s3 + $0x20] sm:$0xff]
    %v513 = vld [vmem:[%s3 + $0x28] sm:$0xff]
    %v514 = vld [vmem:[%s3 + $0x30] sm:$0xff]
    %v515 = vld [vmem:[%s3 + $0x38] sm:$0xff]
    %v516 = vld [vmem:[%s3 + $0x40] sm:$0xff]
    %v517 = vld [vmem:[%s3 + $0x48] sm:$0xff]
    %v518 = vld [vmem:[%s3 + $0x50] sm:$0xff]
    %v519 = vld [vmem:[%s3 + $0x58] sm:$0xff]
    %v520 = vld [vmem:[%s3 + $0x60] sm:$0xff]
    %v521 = vld [vmem:[%s3 + $0x68] sm:$0xff]
    %v522 = vld [vmem:[%s3 + $0x70] sm:$0xff]
    %v523 = vld [vmem:[%s3 + $0x78] sm:$0xff]
    %v524 = vld [vmem:[%s3 + $0x80] sm:$0xff]
    %v525 = vld [vmem:[%s3 + $0x88] sm:$0xff]
    %v526 = vld [vmem:[%s3 + $0x90] sm:$0xff]
    %v527 = vld [vmem:[%s3 + $0x98] sm:$0xff]
    %v528 = vld [vmem:[%s3 + $0xa0] sm:$0xff]
    %v529 = vld [vmem:[%s3 + $0xa8] sm:$0xff]
    %v530 = vld [vmem:[%s3 + $0xb0] sm:$0xff]
    %v531 = vld [vmem:[%s3 + $0xb8] sm:$0xff]
    %v532 = vld [vmem:[%s3 + $0xc0] sm:$0xff]
    %v533 = vld [vmem:[%s3 + $0xc8] sm:$0xff]
    %v534 = vld [vmem:[%s3 + $0xd0] sm:$0xff]
    %v535 = vld [vmem:[%s3 + $0xd8] sm:$0xff]
    %v536 = vld [vmem:[%s3 + $0xe0] sm:$0xff]
    %v537 = vld [vmem:[%s3 + $0xe8] sm:$0xff]
    %v538 = vld [vmem:[%s3 + $0xf0] sm:$0xff]
    %v539 = vld [vmem:[%s3 + $0xf8] sm:$0xff]
    %v541 = vlaneseq
    %v542 = vshrl.u32 %v541, 7
    %v543 = vsub.s32 0, %v542
    %v544 = vrot.slane %v37, %v543
    %546 = vmatprep.subr.mxu0 0.0
    %547 = vmatpush1.msra.mxu0 %v508
    %548 = vmatprep.subr.mxu0 0.0
    %549 = vmatpush1.msra.mxu0 %v509
    %550 = vmatprep.subr.mxu0 0.0
    %551 = vmatpush1.msra.mxu0 %v510
    %552 = vmatprep.subr.mxu0 0.0
    %553 = vmatpush1.msra.mxu0 %v511
    %554 = vmatprep.subr.mxu0 0.0
    %555 = vmatpush1.msra.mxu0 %v512
    %556 = vmatprep.subr.mxu0 0.0
    %557 = vmatpush1.msra.mxu0 %v513
    %558 = vmatprep.subr.mxu0 0.0
    %559 = vmatpush1.msra.mxu0 %v514
    %560 = vmatprep.subr.mxu0 0.0
    %561 = vmatpush1.msra.mxu0 %v515
    %562 = vmatprep.subr.mxu0 0.0
    %563 = vmatpush1.msra.mxu0 %v516
    %564 = vmatprep.subr.mxu0 0.0
    %565 = vmatpush1.msra.mxu0 %v517
    %566 = vmatprep.subr.mxu0 0.0
    %567 = vmatpush1.msra.mxu0 %v518
    %568 = vmatprep.subr.mxu0 0.0
    %569 = vmatpush1.msra.mxu0 %v519
    %570 = vmatprep.subr.mxu0 0.0
    %571 = vmatpush1.msra.mxu0 %v520
    %572 = vmatprep.subr.mxu0 0.0
    %573 = vmatpush1.msra.mxu0 %v521
    %574 = vmatprep.subr.mxu0 0.0
    %575 = vmatpush1.msra.mxu0 %v522
    %576 = vmatprep.subr.mxu0 0.0
    %577 = vmatpush1.msra.mxu0 %v523
    %578 = vmatprep.subr.mxu0 0.0
    %579 = vmatpush1.msra.mxu0 %v524
    %580 = vmatprep.subr.mxu0 0.0
    %581 = vmatpush1.msra.mxu0 %v525
    %582 = vmatprep.subr.mxu0 0.0
    %583 = vmatpush1.msra.mxu0 %v526
    %584 = vmatprep.subr.mxu0 0.0
    %585 = vmatpush1.msra.mxu0 %v527
    %586 = vmatprep.subr.mxu0 0.0
    %587 = vmatpush1.msra.mxu0 %v528
    %588 = vmatprep.subr.mxu0 0.0
    %589 = vmatpush1.msra.mxu0 %v529
    %590 = vmatprep.subr.mxu0 0.0
    %591 = vmatpush1.msra.mxu0 %v530
    %592 = vmatprep.subr.mxu0 0.0
    %593 = vmatpush1.msra.mxu0 %v531
    %594 = vmatprep.subr.mxu0 0.0
    %595 = vmatpush1.msra.mxu0 %v532
    %596 = vmatprep.subr.mxu0 0.0
    %597 = vmatpush1.msra.mxu0 %v533
    %598 = vmatprep.subr.mxu0 0.0
    %599 = vmatpush1.msra.mxu0 %v534
    %600 = vmatprep.subr.mxu0 0.0
    %601 = vmatpush1.msra.mxu0 %v535
    %602 = vmatprep.subr.mxu0 0.0
    %603 = vmatpush1.msra.mxu0 %v536
    %604 = vmatprep.subr.mxu0 0.0
    %605 = vmatpush1.msra.mxu0 %v537
    %606 = vmatprep.subr.mxu0 0.0
    %607 = vmatpush1.msra.mxu0 %v538
    %608 = vmatprep.subr.mxu0 0.0
    %609 = vmatpush1.msra.mxu0 %v539
    %610 = vmatprep.mubr.f32.mxu0 %v507
    %611 = vmatmul.mubr.f32.gmra.mrb[0].mxu0 %v506
    %v612 = vpop.f32.mrb[0].mxu0
    %v613 = vadd.f32 %v544, %v612
    %v614 = vpop.f32.mrb[0].mxu0
    %615 = vdwg.mxu0
    %617 = vset.pattern.permute.xlu0 0
    %618 = vperm.xlu0 %617, %v613
    %v619 = vpop.permute.xlu0 %618
    %v621 = vadd.f32 %v619, %v613
    %622 = vrot.lane.b32.xlu0 %v613, 127
    %v623 = vpop.permute.xlu0 %622
    %vm625 = vcmask 31744
    %v626 = vsel %vm625, %v623, 0.0
    %627 = vadd.xlane.f32.xlu0 %v626
    %v628 = vpop.xlane.xlu0 %627
    %v629 = vrot.slane %v628, 4
    %v630 = vadd.f32 %v628, %v629
    %v631 = vrot.slane %v630, 2
    %v632 = vadd.f32 %v630, %v631
    %v633 = vrot.slane %v632, 1
    %v634 = vadd.f32 %v632, %v633
    %s635 = vtos %v634
    %v636 = vrcp.pop 32.0
    %s637 = vtos %v636
    %s638 = smul.f32 %s635, %s637
    %v639 = vstv %s638
    %v640 = vsub.f32 %v621, %v639
    %642 = vrot.lane.b32.xlu0 %v640, 127
    %v643 = vpop.permute.xlu0 %642
    %645 = vst.msk [vmem:[%s5] sm:$0xff] %vm625, %v643
    // Predicated region
    $region26: #{tpu_custom_call.1} parent=1 // pred_check
      _
    $region27: #{tpu_custom_call.1} parent=1 // pred_check_branch
      %647 = sbr.rel (0) target = $region29
    $region28: #{tpu_custom_call.1} parent=1 // pred_region
      _
    $region29: #{tpu_custom_call.1} parent=1 // pred_fallthru
      _
    // Predicated region
    $region30: #{tpu_custom_call.1} parent=1 // pred_check
      _
    $region31: #{tpu_custom_call.1} parent=1 // pred_check_branch
      %649 = sbr.rel (0) target = $region33
    $region32: #{tpu_custom_call.1} parent=1 // pred_region
      _
    $region33: #{tpu_custom_call.1} parent=1 // pred_fallthru
      _
    %650 = vsyncpa [#allocation3], 1

</llo_original>
